<compile_context>
chip_gen: v6e
topology: v6e:2x2x1
jax: 0.10.0
libtpu: 0.0.40
codegen_flags: <defaults>
</compile_context>

<pallas_src>
import functools

import numpy as np
import jax
import jax.numpy as jnp
from jax.experimental import pallas as pl
from jax.experimental.pallas import tpu as pltpu


def _round_up(x, m):
    return ((x + m - 1) // m) * m


def _cdiv(a, b):
    return (a + b - 1) // b


# ----------------------------------------------------------------------------
# Pallas kernel: frames @ [C_re|C_im]  ->  |.|^power  ->  scale  ->  log1p
# ----------------------------------------------------------------------------
def _vqt_kernel(s_ref, k_ref, o_ref, *, nb_pad, power, scale):
    # s_ref : (TF, NF_pad)       audio frames (compute dtype: bf16 or f32)
    # k_ref : (NF_pad, 2*nb_pad) fused hann*DFT*VQT matrix  [C_re | C_im]
    # o_ref : (TF, nb_pad)       f32
    v = jnp.dot(s_ref[...], k_ref[...], preferred_element_type=jnp.float32)
    v_re = v[:, :nb_pad]              # lane-aligned split (nb_pad % 128 == 0)
    v_im = v[:, nb_pad:]
    p2 = v_re * v_re + v_im * v_im
    if power == 2:                    # sqrt-free path
        mag = p2
    elif power == 1:
        mag = jnp.sqrt(p2)
    else:                             # general static power
        mag = p2 ** (0.5 * power)
    o_ref[...] = jnp.log1p(scale * mag)


# ----------------------------------------------------------------------------
# Module mirroring VQTNotesSpectCustom (__init__ kernel construction in numpy)
# ----------------------------------------------------------------------------
class VQTNotesSpectCustomPallas:
    def __init__(self, sample_rate=22050, n_fft=1024, hop_length=512,
                 f_min=30, f_max=10000, n_bins=128, gamma=None,
                 bins_per_octave=12, power=1, normalized=True,
                 log_multiplier=1000, compute_dtype=jnp.bfloat16,
                 frame_tile=1024):
        self.sample_rate = sample_rate
        self.n_fft = n_fft
        self.hop_length = hop_length
        self.f_min = f_min
        self.f_max = f_max
        self.n_bins = n_bins
        self.bins_per_octave = bins_per_octave
        self.power = power
        self.normalized = normalized
        self.log_multiplier = log_multiplier
        self.gamma = 25.0 if gamma is None else gamma
        self.compute_dtype = compute_dtype
        # <=1024 frames/tile is safe on every generation (v5e's 16 MiB scoped
        # VMEM included); v6e/v7x can pass frame_tile=2048 for extra throughput.
        self.frame_tile = max(16, _round_up(int(frame_tile), 16))
        self._initialize_kernels()
        self._build_fused_kernel_matrix()
        self._forward = jax.jit(self._forward_impl)

    # --- deterministic "parameter" construction (mirrors the torch module) --
    def _initialize_kernels(self):
        self.frequencies = self._get_frequencies()
        self.vqt_kernels = self._get_vqt_kernels()

    def _get_frequencies(self):
        # NOTE: mirrors the reference exactly (factor = 2 * (1/bpo), NOT
        # 2 ** (1/bpo)) — keep the spec's semantics.
        factor = 2 * (1 / self.bins_per_octave)
        freqs = self.f_min * factor ** np.arange(0, self.n_bins)
        freqs = freqs[freqs <= self.f_max]
        self.n_bins = len(freqs)
        return freqs

    def _get_quality_factors(self):
        q_zero = 1 / (2 ** (1 / self.bins_per_octave) - 1)
        bin_indices = np.arange(self.n_bins)
        if self.gamma > 0:
            return q_zero / (1 + self.gamma * (bin_indices / self.n_bins))
        return np.ones(self.n_bins, dtype=np.float64) * q_zero

    def _get_vqt_kernels(self):
        q_factors = self._get_quality_factors()
        kernels = np.zeros((self.n_bins, self.n_fft // 2 + 1),
                           dtype=np.complex64)
        for k, (freq, q) in enumerate(zip(self.frequencies, q_factors)):
            bandwidth = freq / q
            fft_bin = freq * self.n_fft / self.sample_rate
            bw_bins = bandwidth * self.n_fft / self.sample_rate
            bin_start = max(0, int(fft_bin - bw_bins * 2))
            bin_end = min(self.n_fft // 2 + 1, int(fft_bin + bw_bins * 2))
            fft_indices = np.arange(bin_start, bin_end)
            sigma = bw_bins / 4
            response = np.exp(-0.5 * ((fft_indices - fft_bin) / sigma) ** 2)
            if np.sum(response) > 0:
                response = response / np.sum(response)
            phase = -2 * np.pi * fft_indices * (0.5 * self.n_fft) / self.n_fft
            kernels[k, bin_start:bin_end] = response * np.exp(1j * phase)
        return kernels

    # --- fold hann window + one-sided DFT + VQT kernels into one real matrix
    def _build_fused_kernel_matrix(self):
        n_fft = self.n_fft
        NR = n_fft // 2 + 1
        NB = self.n_bins
        self._nb_pad = _round_up(max(NB, 1), 128)
        self._nf_pad = _round_up(n_fft, 128)      # no-op when n_fft % 128 == 0

        t = np.arange(n_fft, dtype=np.float64)
        window = 0.5 * (1.0 - np.cos(2.0 * np.pi * t / n_fft))  # periodic hann
        f = np.arange(NR, dtype=np.float64)
        dft = np.exp(-2j * np.pi * np.outer(f, t) / n_fft)       # (NR, n_fft)
        # K @ rfft(w * frame)  ==  frame @ [(K @ DFT) * w]^T
        c = (self.vqt_kernels.astype(np.complex128) @ dft) * window[None, :]

        m = np.zeros((self._nf_pad, 2 * self._nb_pad), np.float32)
        m[:n_fft, :NB] = np.real(c).T
        m[:n_fft, self._nb_pad:self._nb_pad + NB] = np.imag(c).T
        self._k_fused = m
        # Device-resident, compute-dtype copy (no per-call transfer / cast).
        self._k_dev = jnp.asarray(m, dtype=self.compute_dtype)

    # --- framing glue (XLA layout ops only) ----------------------------------
    def _pad_signal(self, x):
        # torch.stft defaults: center=True, pad_mode='reflect', onesided=True.
        pad = self.n_fft // 2
        x_pad = jnp.pad(x.astype(jnp.float32), ((0, 0), (pad, pad)),
                        mode='reflect')
        n_frames = 1 + (x_pad.shape[1] - self.n_fft) // self.hop_length
        return x_pad, int(n_frames)

    def _frames(self, x_pad, n_frames):
        # (B, L) -> (B, n_frames, n_fft) frames WITHOUT windowing (the hann
        # window is folded into the fused kernel matrix).  Zero-extends the
        # signal so trailing (padding) frames exist; they are sliced away
        # after the Pallas kernel.
        B = x_pad.shape[0]
        n_fft, hop = self.n_fft, self.hop_length
        need = (n_frames - 1) * hop + n_fft
        if x_pad.shape[1] < need:
            x_pad = jnp.pad(x_pad, ((0, 0), (0, need - x_pad.shape[1])))
        if n_fft % hop == 0:
            # Strided framing: r hop-shifted views + one concat (no gather).
            r = n_fft // hop
            n_chunks = n_frames + r - 1
            xc = x_pad[:, :n_chunks * hop].reshape(B, n_chunks, hop)
            return jnp.concatenate(
                [xc[:, i:i + n_frames, :] for i in range(r)], axis=-1)
        # TODO(synk): general hop (hop not dividing n_fft) falls back to a
        # gather-based framing in XLA glue.
        idx = (jnp.arange(n_frames)[:, None] * hop
               + jnp.arange(n_fft)[None, :])
        return x_pad[:, idx]

    # --- forward --------------------------------------------------------------
    def _forward_impl(self, x):
        x_dim = x.ndim
        if x_dim == 1:
            x = x[None, :]
        B = x.shape[0]
        n_fft = self.n_fft
        NB = self.n_bins
        nb_pad, nf_pad = self._nb_pad, self._nf_pad

        x_pad, F = self._pad_signal(x)

        # Adaptive frame tile: balance tiles (bounded zero-frame waste) and
        # keep >= 2 parallel grid steps when B == 1 (dual-TC occupancy on v7x).
        nt = max(1, _cdiv(F, self.frame_tile))
        if B == 1 and F > 16:
            nt = max(nt, 2)
        tf = _round_up(_cdiv(F, nt), 16)
        f_pad = _round_up(F, tf)

        frames = self._frames(x_pad.astype(self.compute_dtype), f_pad)
        if nf_pad != n_fft:
            frames = jnp.pad(frames, ((0, 0), (0, 0), (0, nf_pad - n_fft)))

        # Fold normalization + log multiplier into one epilogue constant.
        scale = (self.log_multiplier / n_fft) if self.normalized \
            else float(self.log_multiplier)
        kern = functools.partial(_vqt_kernel, nb_pad=nb_pad,
                                 power=self.power, scale=scale)

        out = pl.pallas_call(
            kern,
            out_shape=jax.ShapeDtypeStruct((B, f_pad, nb_pad), jnp.float32),
            grid=(B, f_pad // tf),
            in_specs=[
                # frames: one (tf, nf_pad) tile per grid step
                pl.BlockSpec((None, tf, nf_pad), lambda b, f: (b, f, 0)),
                # fused kernel matrix: grid-invariant (fetched once)
                pl.BlockSpec((nf_pad, 2 * nb_pad), lambda b, f: (0, 0)),
            ],
            out_specs=pl.BlockSpec((None, tf, nb_pad), lambda b, f: (b, f, 0)),
            compiler_params=pltpu.CompilerParams(
                dimension_semantics=("parallel", "parallel")),
        )(frames, self._k_dev)

        out = out[:, :F, :NB]                       # drop frame / bin padding
        # torch's trailing squeeze/transpose behavior (B==1 squeezes, per spec)
        if x_dim == 1 or B == 1:
            return out[0]                           # (F, NB)
        return out                                  # (B, F, NB)

    def __call__(self, x):
        return self._forward(jnp.asarray(x))


# ----------------------------------------------------------------------------
# References for correctness checking
# ----------------------------------------------------------------------------
def _reference(module, x_np):
    # Pure numpy / float64 mirror of the torch module forward (rfft path).
    if x_np.ndim == 1:
        x_np = x_np[None, :]
    n_fft, hop = module.n_fft, module.hop_length
    n = np.arange(n_fft)
    window = 0.5 * (1.0 - np.cos(2.0 * np.pi * n / n_fft))
    pad = n_fft // 2
    x_pad = np.pad(x_np.astype(np.float64), ((0, 0), (pad, pad)),
                   mode='reflect')
    n_frames = 1 + (x_pad.shape[1] - n_fft) // hop
    idx = np.arange(n_frames)[:, None] * hop + np.arange(n_fft)[None, :]
    frames = x_pad[:, idx] * window[None, None, :]
    stft = np.fft.rfft(frames, axis=-1)                    # (B, F, NR)
    K = module.vqt_kernels.astype(np.complex128)           # (NB, NR)
    vqt = np.einsum('kr,bfr->bfk', K, stft)                # (B, F, NB)
    mag = np.abs(vqt) ** module.power
    if module.normalized:
        mag = mag / module.n_fft
    return np.log1p(module.log_multiplier * mag)           # (B, F, NB)


def _emulated_fused(module, x_np):
    # Emulates the Pallas kernel math exactly (same compute-dtype input
    # quantization, float64 accumulation) -> tight check of framing, the fused
    # DFT matrix and the epilogue, independent of compute-dtype rounding.
    x = jnp.asarray(x_np, dtype=jnp.float32)
    if x.ndim == 1:
        x = x[None, :]
    x_pad, F = module._pad_signal(x)
    frames = module._frames(x_pad.astype(module.compute_dtype), F)
    fq = np.asarray(frames).astype(np.float64)              # (B, F, n_fft)
    kq = np.asarray(module._k_dev).astype(np.float64)       # (nf_pad, 2*nb_pad)
    v = fq @ kq[:module.n_fft]
    nb_pad = module._nb_pad
    v_re, v_im = v[..., :nb_pad], v[..., nb_pad:]
    p2 = v_re * v_re + v_im * v_im
    if module.power == 2:
        mag = p2
    elif module.power == 1:
        mag = np.sqrt(p2)
    else:
        mag = p2 ** (0.5 * module.power)
    scale = (module.log_multiplier / module.n_fft) if module.normalized \
        else float(module.log_multiplier)
    return np.log1p(scale * mag)[:, :, :module.n_bins]


if __name__ == "__main__":
    # Small, module-consistent hyperparameters.
    B, T = 2, 1024
    common = dict(sample_rate=22050, n_fft=256, hop_length=128,
                  f_min=2000, f_max=10000, n_bins=32, power=1,
                  normalized=True, log_multiplier=1000)

    key = jax.random.PRNGKey(0)
    x = jax.random.normal(key, (B, T), dtype=jnp.float32)
    x_np = np.asarray(x)

    # --- bf16 compute (default / fast MXU path) ------------------------------
    mod_bf16 = VQTNotesSpectCustomPallas(**common)
    out_bf16 = np.asarray(jax.block_until_ready(mod_bf16(x)))
    ref = _reference(mod_bf16, x_np)
    assert out_bf16.shape == ref.shape, (out_bf16.shape, ref.shape)
    # Tight check vs. exact emulation of the kernel math (same bf16 input
    # quantization, f64 accumulation).
    emu = _emulated_fused(mod_bf16, x_np)
    np.testing.assert_allclose(out_bf16, emu, rtol=5e-3, atol=5e-3)
    # Loose end-to-end check vs. the float64 torch-semantics reference.
    np.testing.assert_allclose(out_bf16, ref, rtol=1e-1, atol=1e-1)

    # --- f32 compute path (precision option) ---------------------------------
    mod_f32 = VQTNotesSpectCustomPallas(compute_dtype=jnp.float32, **common)
    out_f32 = np.asarray(jax.block_until_ready(mod_f32(x)))
    np.testing.assert_allclose(out_f32, ref, rtol=5e-2, atol=5e-2)

    # --- 1-D input path (mirrors torch squeeze/transpose behavior) -----------
    out_1d = np.asarray(jax.block_until_ready(mod_f32(x[0])))
    assert out_1d.shape == ref[0].shape, (out_1d.shape, ref[0].shape)
    np.testing.assert_allclose(out_1d, ref[0], rtol=5e-2, atol=5e-2)

    print("KERNEL_OK")
</pallas_src>

<mosaic_0001>
module attributes {stable_mosaic.version = 11 : i64} {
  func.func @_vqt_kernel(%arg0: i32, %arg1: i32, %arg2: memref<1x16x256xbf16, #tpu.memory_space<vmem>>, %arg3: memref<256x256xbf16, #tpu.memory_space<vmem>>, %arg4: memref<1x16x128xf32, #tpu.memory_space<vmem>>) attributes {dimension_semantics = [#tpu.dimension_semantics<parallel>, #tpu.dimension_semantics<parallel>], iteration_bounds = array<i64: 2, 1>, scalar_prefetch = 0 : i64, scratch_operands = 0 : i64, tpu.core_type = #tpu.core_type<tc>, window_params = [{transform_indices = @transform_0, window_bounds = array<i64: 1, 16, 256>}, {pipeline_mode = #tpu.pipeline_mode<synchronous>, transform_indices = @transform_1, window_bounds = array<i64: 256, 256>}, {transform_indices = @transform_2, window_bounds = array<i64: 1, 16, 128>}]} {
    %c0 = arith.constant 0 : index
    %c0_0 = arith.constant 0 : index
    %c0_1 = arith.constant 0 : index
    %0 = vector.load %arg2[%c0, %c0_0, %c0_1] : memref<1x16x256xbf16, #tpu.memory_space<vmem>>, vector<1x16x256xbf16>
    %1 = vector.shape_cast %0 : vector<1x16x256xbf16> to vector<16x256xbf16>
    %c0_2 = arith.constant 0 : index
    %c0_3 = arith.constant 0 : index
    %2 = vector.load %arg3[%c0_2, %c0_3] : memref<256x256xbf16, #tpu.memory_space<vmem>>, vector<256x256xbf16>
    %cst = arith.constant dense<0.000000e+00> : vector<16x256xf32>
    %3 = tpu.matmul %1, %2, %cst {dimension_numbers = #tpu.dot_dimension_numbers<[1], [0], [0], [1], [0, 0, 1, 1], [], []>} : vector<16x256xbf16>, vector<256x256xbf16>, vector<16x256xf32> -> vector<16x256xf32>
    %4 = vector.extract_strided_slice %3 {offsets = [0, 0], sizes = [16, 128], strides = [1, 1]} : vector<16x256xf32> to vector<16x128xf32>
    %5 = vector.extract_strided_slice %3 {offsets = [0, 128], sizes = [16, 128], strides = [1, 1]} : vector<16x256xf32> to vector<16x128xf32>
    %6 = arith.mulf %4, %4 : vector<16x128xf32>
    %7 = arith.mulf %5, %5 : vector<16x128xf32>
    %8 = arith.addf %6, %7 : vector<16x128xf32>
    %9 = math.sqrt %8 : vector<16x128xf32>
    %cst_4 = arith.constant 3.906250e+00 : f32
    %10 = vector.broadcast %cst_4 : f32 to vector<16x128xf32>
    %11 = arith.mulf %10, %9 : vector<16x128xf32>
    %12 = math.log1p %11 : vector<16x128xf32>
    %c0_5 = arith.constant 0 : index
    %c0_6 = arith.constant 0 : index
    %c0_7 = arith.constant 0 : index
    %13 = vector.load %arg4[%c0_5, %c0_6, %c0_7] : memref<1x16x128xf32, #tpu.memory_space<vmem>>, vector<1x16x128xf32>
    %14 = vector.shape_cast %13 : vector<1x16x128xf32> to vector<16x128xf32>
    %15 = vector.shape_cast %12 : vector<16x128xf32> to vector<1x16x128xf32>
    tpu.vector_store %arg4[%c0_5, %c0_6, %c0_7], %15 {strides = array<i32>} : memref<1x16x128xf32, #tpu.memory_space<vmem>>, vector<1x16x128xf32>,
    return
  }
  func.func @transform_0(%arg0: i32, %arg1: i32) -> (i32, i32, i32) {
    %c0_i32 = arith.constant 0 : i32
    %c0_i32_0 = arith.constant 0 : i32
    return %arg0, %arg1, %c0_i32 : i32, i32, i32
  }
  func.func @transform_1(%arg0: i32, %arg1: i32) -> (i32, i32) {
    %c0_i32 = arith.constant 0 : i32
    %c0_i32_0 = arith.constant 0 : i32
    %c0_i32_1 = arith.constant 0 : i32
    return %c0_i32, %c0_i32_0 : i32, i32
  }
  func.func @transform_2(%arg0: i32, %arg1: i32) -> (i32, i32, i32) {
    %c0_i32 = arith.constant 0 : i32
    %c0_i32_0 = arith.constant 0 : i32
    return %arg0, %arg1, %c0_i32 : i32, i32, i32
  }
}

</mosaic_0001>

<llo_original>
// kernel: _forward_impl.1
$region0: #{_forward_impl.1}
  #allocation0 [shape = 'u32[]', space=smem, size = 0x4, offset = 0x4, fixed_abs, tag = 'smem constant byte address 0x4 - core index']
  #allocation1 [shape = 'u32[144,128]{1,0:T(1,128)}', space=vmem, size = 0x12000, scoped, tag = 'internal scratch']
  %s0 = inlined_call_operand.vmem [shape: bf16[2,16,256], index: 0, kind: input, shape index: {}]
  %s1 = inlined_call_operand.hbm [shape: bf16[256,256], index: 1, kind: input, shape index: {}]
  %s2 = inlined_call_operand.vmem [shape: f32[2,16,128], index: 2, kind: output, shape index: {}]
  %s3 = sld [smem:[#allocation0]]
  $region45: #{_forward_impl.1} parent=0
    _
  %s5 = ssub.s32 1, %s3
  %s6 = scalar_select 0, %s5, %s3
  $region1: #{_forward_impl.1} parent=0
    #allocation2 [shape = 'u8[131072]{0}', space=vmem, size = 0x20000, scoped, tag = 'input window, operand 1, single buffered']
    #allocation3 [shape = 's32[2]{0}', space=sflag, size = 0x8, scoped, tag = 'scoped memory for _forward_impl.1']
    %7 = vsyncpa [#allocation3], 0
    loop: start=0, step=1, limit=4
    $region2: #{_forward_impl.1} parent=1 // loop_pre_header
      _
    $region3: #{_forward_impl.1} parent=1 // loop_header
      %s9 = sphi 0, %s13
      %p10 = scmp.ge.s32.totalorder %s9, 4
      %s16 = sphi 0, %s28
      %s17 = sphi 0, %s24
      %s18 = sphi 0, %s16
      %s19 = sphi 0, %s17
      %s20 = sphi 0, %s18
      %s21 = sphi 0, %s19
      %s33 = sphi 0, %s35
      %s36 = sphi 0, %s33
      %s37 = sphi 0, %s36
      %s53 = sphi 0, %s37
      %s57 = sphi 0, %s57
      %s59 = sphi 0, %s57
      %s60 = sphi 0, %s59
      %s74 = sphi 0, %s60
      %s82 = sphi 0, %s84
      %s85 = sphi 0, %s82
      %s86 = sphi 0, %s85
      %s102 = sphi 0, %s86
    $region4: #{_forward_impl.1} parent=1 // loop_header_branch
      %12 = sbr.rel (%p10) target = $region8
    $region5: #{_forward_impl.1} parent=1 // loop_body
      %s14 = ssub.s32 %s9, 1
      %s15 = ssub.s32 %s9, 2
      %s22 = sadd.s32 1, %s17
      %p23 = scmp.ge.s32.totalorder %s22, 1
      %s24 = scalar_select %p23, 0, %s22
      %s25 = sadd.s32 1, %s16
      %s26 = scalar_select %p23, %s25, %s16
      %p27 = scmp.ge.s32.totalorder %s26, 2
      %s28 = scalar_select %p27, 0, %s26
      %s29 = ssub.s32 %s16, %s28
      %s30 = ssub.s32 %s17, %s24
      %s31 = sor.u32 %s29, %s30
      %p32 = scmp.eq.s32.totalorder %s31, 0
      %s34 = sadd.s32 %s33, 1
      %s35 = scalar_select %p32, %s33, %s34
      %p38 = pneg %p32
      %p39 = scmp.eq.s32.totalorder %s9, 1
      %p40 = por %p38, %p39
      %p41 = scmp.ne.s32.totalorder %s33, %s36
      %p42 = scmp.eq.s32.totalorder %s9, 0
      %p43 = por %p41, %p42
      %p44 = scmp.ne.s32.totalorder %s33, %s36
      %p45 = scmp.eq.s32.totalorder %s14, 1
      %p46 = por %p44, %p45
      %p47 = scmp.ne.s32.totalorder %s36, %s37
      %p48 = scmp.eq.s32.totalorder %s14, 0
      %p49 = por %p47, %p48
      %p50 = scmp.ne.s32.totalorder %s36, %s37
      %p51 = scmp.eq.s32.totalorder %s15, 1
      %p52 = por %p50, %p51
      %p54 = scmp.ne.s32.totalorder %s37, %s53
      %p55 = scmp.eq.s32.totalorder %s15, 0
      %p56 = por %p54, %p55
      %s58 = sadd.s32 %s57, 1
      %p61 = scmp.eq.s32.totalorder %s9, 1
      %p62 = scmp.ne.s32.totalorder %s57, %s59
      %p63 = scmp.eq.s32.totalorder %s9, 0
      %p64 = por %p62, %p63
      %p65 = scmp.ne.s32.totalorder %s57, %s59
      %p66 = scmp.eq.s32.totalorder %s14, 1
      %p67 = por %p65, %p66
      %p68 = scmp.ne.s32.totalorder %s59, %s60
      %p69 = scmp.eq.s32.totalorder %s14, 0
      %p70 = por %p68, %p69
      %p71 = scmp.ne.s32.totalorder %s59, %s60
      %p72 = scmp.eq.s32.totalorder %s15, 1
      %p73 = por %p71, %p72
      %p75 = scmp.ne.s32.totalorder %s60, %s74
      %p76 = scmp.eq.s32.totalorder %s15, 0
      %p77 = por %p75, %p76
      %s78 = ssub.s32 %s16, %s28
      %s79 = ssub.s32 %s17, %s24
      %s80 = sor.u32 %s78, %s79
      %p81 = scmp.eq.s32.totalorder %s80, 0
      %s83 = sadd.s32 %s82, 1
      %s84 = scalar_select %p81, %s82, %s83
      %p87 = pneg %p81
      %p88 = scmp.eq.s32.totalorder %s9, 1
      %p89 = por %p87, %p88
      %p90 = scmp.ne.s32.totalorder %s82, %s85
      %p91 = scmp.eq.s32.totalorder %s9, 0
      %p92 = por %p90, %p91
      %p93 = scmp.ne.s32.totalorder %s82, %s85
      %p94 = scmp.eq.s32.totalorder %s14, 1
      %p95 = por %p93, %p94
      %p96 = scmp.ne.s32.totalorder %s85, %s86
      %p97 = scmp.eq.s32.totalorder %s14, 0
      %p98 = por %p96, %p97
      %p99 = scmp.ne.s32.totalorder %s85, %s86
      %p100 = scmp.eq.s32.totalorder %s15, 1
      %p101 = por %p99, %p100
      %p103 = scmp.ne.s32.totalorder %s86, %s102
      %p104 = scmp.eq.s32.totalorder %s15, 0
      %p105 = por %p103, %p104
      %p106 = scmp.le.s32.totalorder 1, %s9
      %p107 = scmp.lt.s32.totalorder %s9, 3
      %p108 = pnand %p106, %p107
      %p109 = pneg %p108
      // Predicated region
      $region9: #{_forward_impl.1} parent=5 // pred_check
        _
      $region10: #{_forward_impl.1} parent=5 // pred_check_branch
        %111 = sbr.rel (%p108) target = $region12
      $region11: #{_forward_impl.1} parent=5 // pred_region
        %s112 = ssub.s32 %s9, 1
        // Predicated region
        $region13: #{_forward_impl.1} parent=11 // pred_check
          %p113 = pneg %p70
        $region14: #{_forward_impl.1} parent=11 // pred_check_branch
          %115 = sbr.rel (%p113) target = $region16
        $region15: #{_forward_impl.1} parent=11 // pred_region
          %s117 = ssub.s32 4096, 4096
          %118 = vsyncadd [#allocation3], %s117
          %s119 = sshll.u32 [#allocation2], 4
          %s120 = int_to_ptr.vmem [resolvable:$true] %s119
          %125 = dma.hbm_to_vmem [thread:$0]  %s1, 4096, %s120, [#allocation3], 128, 128, 8
        $region16: #{_forward_impl.1} parent=11 // pred_fallthru
          _
      $region12: #{_forward_impl.1} parent=5 // pred_fallthru
        _
      %p126 = scmp.lt.s32.totalorder %s9, 2
      // Predicated region
      $region17: #{_forward_impl.1} parent=5 // pred_check
        %p127 = pneg %p126
      $region18: #{_forward_impl.1} parent=5 // pred_check_branch
        %129 = sbr.rel (%p127) target = $region20
      $region19: #{_forward_impl.1} parent=5 // pred_region
        // Predicated region
        $region21: #{_forward_impl.1} parent=19 // pred_check
          %p130 = pneg %p43
        $region22: #{_forward_impl.1} parent=19 // pred_check_branch
          %132 = sbr.rel (%p130) target = $region24
        $region23: #{_forward_impl.1} parent=19 // pred_region
          %s133 = smul.u32 2, %s17
          %p134 = scmp.lt.s32.totalorder %s16, 1
          %s135 = scalar_select %p134, %s16, 1
          %p136 = scmp.lt.s32.totalorder %s133, 1
          %s137 = scalar_select %p136, %s133, 1
          %s138 = smul.addr %s137, 2
          %s139 = smul.addr %s135, 4
          %s140 = sadd.s32 %s138, %s139
          %s141 = smul.addr %s140, 4
          %s142 = scalar_lea.vmem %s0, %s141
          %s143 = smul.u32 2, %s17
        $region24: #{_forward_impl.1} parent=19 // pred_fallthru
          _
      $region20: #{_forward_impl.1} parent=5 // pred_fallthru
        _
      %p144 = scmp.le.s32.totalorder 1, %s9
      %p145 = scmp.lt.s32.totalorder %s9, 3
      %p146 = pnand %p144, %p145
      %p147 = pneg %p146
      // Predicated region
      $region25: #{_forward_impl.1} parent=5 // pred_check
        _
      $region26: #{_forward_impl.1} parent=5 // pred_check_branch
        %149 = sbr.rel (%p146) target = $region28
      $region27: #{_forward_impl.1} parent=5 // pred_region
        %s150 = ssub.s32 %s9, 1
        // Predicated region
        $region29: #{_forward_impl.1} parent=27 // pred_check
          %p151 = pneg %p70
        $region30: #{_forward_impl.1} parent=27 // pred_check_branch
          %153 = sbr.rel (%p151) target = $region32
        $region31: #{_forward_impl.1} parent=27 // pred_region
          %154 = dma.done [#allocation3], 4096
        $region32: #{_forward_impl.1} parent=27 // pred_fallthru
          _
        %s155 = smul.u32 2, %s19
        %p156 = scmp.lt.s32.totalorder %s18, 1
        %s157 = scalar_select %p156, %s18, 1
        %p158 = scmp.lt.s32.totalorder %s155, 1
        %s159 = scalar_select %p158, %s155, 1
        %s160 = smul.addr %s159, 2
        %s161 = smul.addr %s157, 4
        %s162 = sadd.s32 %s160, %s161
        %s163 = smul.addr %s162, 4
        %s164 = scalar_lea.vmem %s0, %s163
        %p165 = pneg %p49
        %p166 = pneg %p46
        %p167 = pneg %p70
        %p168 = pneg %p67
        %p169 = pneg %p98
        %p170 = pneg %p95
        %s171 = smul.u32 2, %s19
        %p172 = scmp.lt.s32.totalorder %s18, 1
        %s173 = scalar_select %p172, %s18, 1
        %p174 = scmp.lt.s32.totalorder %s171, 1
        %s175 = scalar_select %p174, %s171, 1
        %s176 = smul.addr %s173, 2
        %s177 = sadd.s32 %s175, %s176
        %s178 = smul.addr %s177, 8
        %s179 = scalar_lea.vmem %s2, %s178
        %s180 = smul.u32 2, %s19
        %p181 = scmp.lt.s32.totalorder %s18, 1
        %s182 = scalar_select %p181, %s18, 1
        %p183 = scmp.lt.s32.totalorder %s180, 1
        %s184 = scalar_select %p183, %s180, 1
        %s185 = smul.addr %s184, 2
        %s186 = smul.addr %s182, 4
        %s187 = sadd.s32 %s185, %s186
        %s188 = smul.addr %s187, 4
        %s189 = scalar_lea.vmem %s0, %s188
        %s190 = smul.u32 2, %s19
        %s191 = smul.u32 2, %s19
        %p192 = scmp.lt.s32.totalorder %s18, 1
        %s193 = scalar_select %p192, %s18, 1
        %p194 = scmp.lt.s32.totalorder %s191, 1
        %s195 = scalar_select %p194, %s191, 1
        %s196 = smul.addr %s193, 2
        %s197 = sadd.s32 %s195, %s196
        %s198 = smul.addr %s197, 8
        %s199 = scalar_lea.vmem %s2, %s198
        %s200 = smul.u32 2, %s19
        %v201 = vld [vmem:[%s189] sm:$0xff]
        %v202 = vld [vmem:[%s189 + $0x8] sm:$0xff]
        %v203 = vld [vmem:[#allocation2] sm:$0xff]
        %v204 = vld [vmem:[#allocation2 + $0x8] sm:$0xff]
        %v205 = vld [vmem:[#allocation2 + $0x10] sm:$0xff]
        %v206 = vld [vmem:[#allocation2 + $0x18] sm:$0xff]
        %v207 = vld [vmem:[#allocation2 + $0x20] sm:$0xff]
        %v208 = vld [vmem:[#allocation2 + $0x28] sm:$0xff]
        %v209 = vld [vmem:[#allocation2 + $0x30] sm:$0xff]
        %v210 = vld [vmem:[#allocation2 + $0x38] sm:$0xff]
        %v211 = vld [vmem:[#allocation2 + $0x40] sm:$0xff]
        %v212 = vld [vmem:[#allocation2 + $0x48] sm:$0xff]
        %v213 = vld [vmem:[#allocation2 + $0x50] sm:$0xff]
        %v214 = vld [vmem:[#allocation2 + $0x58] sm:$0xff]
        %v215 = vld [vmem:[#allocation2 + $0x60] sm:$0xff]
        %v216 = vld [vmem:[#allocation2 + $0x68] sm:$0xff]
        %v217 = vld [vmem:[#allocation2 + $0x70] sm:$0xff]
        %v218 = vld [vmem:[#allocation2 + $0x78] sm:$0xff]
        %v219 = vld [vmem:[#allocation2 + $0x80] sm:$0xff]
        %v220 = vld [vmem:[#allocation2 + $0x88] sm:$0xff]
        %v221 = vld [vmem:[#allocation2 + $0x90] sm:$0xff]
        %v222 = vld [vmem:[#allocation2 + $0x98] sm:$0xff]
        %v223 = vld [vmem:[#allocation2 + $0xa0] sm:$0xff]
        %v224 = vld [vmem:[#allocation2 + $0xa8] sm:$0xff]
        %v225 = vld [vmem:[#allocation2 + $0xb0] sm:$0xff]
        %v226 = vld [vmem:[#allocation2 + $0xb8] sm:$0xff]
        %v227 = vld [vmem:[#allocation2 + $0xc0] sm:$0xff]
        %v228 = vld [vmem:[#allocation2 + $0xc8] sm:$0xff]
        %v229 = vld [vmem:[#allocation2 + $0xd0] sm:$0xff]
        %v230 = vld [vmem:[#allocation2 + $0xd8] sm:$0xff]
        %v231 = vld [vmem:[#allocation2 + $0xe0] sm:$0xff]
        %v232 = vld [vmem:[#allocation2 + $0xe8] sm:$0xff]
        %v233 = vld [vmem:[#allocation2 + $0xf0] sm:$0xff]
        %v234 = vld [vmem:[#allocation2 + $0xf8] sm:$0xff]
        %v237 = vunpack.c.l.b16 %v201
        %v238 = vunpack.c.h.b16 %v201
        %v239 = vunpack.c.l.b16 %v202
        %v240 = vunpack.c.h.b16 %v202
        %v241 = vpack.c.b16 %v239, %v237
        %v242 = vpack.c.b16 %v240, %v238
        %v277 = vunpack.c.l.b16 %v203
        %v278 = vunpack.c.h.b16 %v203
        %v279 = vunpack.c.l.b16 %v204
        %v280 = vunpack.c.h.b16 %v204
        %v281 = vunpack.c.l.b16 %v205
        %v282 = vunpack.c.h.b16 %v205
        %v283 = vunpack.c.l.b16 %v206
        %v284 = vunpack.c.h.b16 %v206
        %v285 = vunpack.c.l.b16 %v207
        %v286 = vunpack.c.h.b16 %v207
        %v287 = vunpack.c.l.b16 %v208
        %v288 = vunpack.c.h.b16 %v208
        %v289 = vunpack.c.l.b16 %v209
        %v290 = vunpack.c.h.b16 %v209
        %v291 = vunpack.c.l.b16 %v210
        %v292 = vunpack.c.h.b16 %v210
        %v293 = vunpack.c.l.b16 %v211
        %v294 = vunpack.c.h.b16 %v211
        %v295 = vunpack.c.l.b16 %v212
        %v296 = vunpack.c.h.b16 %v212
        %v297 = vunpack.c.l.b16 %v213
        %v298 = vunpack.c.h.b16 %v213
        %v299 = vunpack.c.l.b16 %v214
        %v300 = vunpack.c.h.b16 %v214
        %v301 = vunpack.c.l.b16 %v215
        %v302 = vunpack.c.h.b16 %v215
        %v303 = vunpack.c.l.b16 %v216
        %v304 = vunpack.c.h.b16 %v216
        %v305 = vunpack.c.l.b16 %v217
        %v306 = vunpack.c.h.b16 %v217
        %v307 = vunpack.c.l.b16 %v218
        %v308 = vunpack.c.h.b16 %v218
        %v309 = vunpack.c.l.b16 %v219
        %v310 = vunpack.c.h.b16 %v219
        %v311 = vunpack.c.l.b16 %v220
        %v312 = vunpack.c.h.b16 %v220
        %v313 = vunpack.c.l.b16 %v221
        %v314 = vunpack.c.h.b16 %v221
        %v315 = vunpack.c.l.b16 %v222
        %v316 = vunpack.c.h.b16 %v222
        %v317 = vunpack.c.l.b16 %v223
        %v318 = vunpack.c.h.b16 %v223
        %v319 = vunpack.c.l.b16 %v224
        %v320 = vunpack.c.h.b16 %v224
        %v321 = vunpack.c.l.b16 %v225
        %v322 = vunpack.c.h.b16 %v225
        %v323 = vunpack.c.l.b16 %v226
        %v324 = vunpack.c.h.b16 %v226
        %v325 = vunpack.c.l.b16 %v227
        %v326 = vunpack.c.h.b16 %v227
        %v327 = vunpack.c.l.b16 %v228
        %v328 = vunpack.c.h.b16 %v228
        %v329 = vunpack.c.l.b16 %v229
        %v330 = vunpack.c.h.b16 %v229
        %v331 = vunpack.c.l.b16 %v230
        %v332 = vunpack.c.h.b16 %v230
        %v333 = vunpack.c.l.b16 %v231
        %v334 = vunpack.c.h.b16 %v231
        %v335 = vunpack.c.l.b16 %v232
        %v336 = vunpack.c.h.b16 %v232
        %v337 = vunpack.c.l.b16 %v233
        %v338 = vunpack.c.h.b16 %v233
        %v339 = vunpack.c.l.b16 %v234
        %v340 = vunpack.c.h.b16 %v234
        %v341 = vpack.c.b16 %v279, %v277
        %v342 = vpack.c.b16 %v280, %v278
        %v343 = vpack.c.b16 %v283, %v281
        %v344 = vpack.c.b16 %v284, %v282
        %v345 = vpack.c.b16 %v287, %v285
        %v346 = vpack.c.b16 %v288, %v286
        %v347 = vpack.c.b16 %v291, %v289
        %v348 = vpack.c.b16 %v292, %v290
        %v349 = vpack.c.b16 %v295, %v293
        %v350 = vpack.c.b16 %v296, %v294
        %v351 = vpack.c.b16 %v299, %v297
        %v352 = vpack.c.b16 %v300, %v298
        %v353 = vpack.c.b16 %v303, %v301
        %v354 = vpack.c.b16 %v304, %v302
        %v355 = vpack.c.b16 %v307, %v305
        %v356 = vpack.c.b16 %v308, %v306
        %v357 = vpack.c.b16 %v311, %v309
        %v358 = vpack.c.b16 %v312, %v310
        %v359 = vpack.c.b16 %v315, %v313
        %v360 = vpack.c.b16 %v316, %v314
        %v361 = vpack.c.b16 %v319, %v317
        %v362 = vpack.c.b16 %v320, %v318
        %v363 = vpack.c.b16 %v323, %v321
        %v364 = vpack.c.b16 %v324, %v322
        %v365 = vpack.c.b16 %v327, %v325
        %v366 = vpack.c.b16 %v328, %v326
        %v367 = vpack.c.b16 %v331, %v329
        %v368 = vpack.c.b16 %v332, %v330
        %v369 = vpack.c.b16 %v335, %v333
        %v370 = vpack.c.b16 %v336, %v334
        %v371 = vpack.c.b16 %v339, %v337
        %v372 = vpack.c.b16 %v340, %v338
        %405 = vmatprep.subr.bf16.mxu0 %v356
        %406 = vmatpush1.bf16.msra.mxu0 %v355
        %407 = vmatprep.subr.bf16.mxu0 %v354
        %408 = vmatpush1.bf16.msra.mxu0 %v353
        %409 = vmatprep.subr.bf16.mxu0 %v352
        %410 = vmatpush1.bf16.msra.mxu0 %v351
        %411 = vmatprep.subr.bf16.mxu0 %v350
        %412 = vmatpush1.bf16.msra.mxu0 %v349
        %413 = vmatprep.subr.bf16.mxu0 %v348
        %414 = vmatpush1.bf16.msra.mxu0 %v347
        %415 = vmatprep.subr.bf16.mxu0 %v346
        %416 = vmatpush1.bf16.msra.mxu0 %v345
        %417 = vmatprep.subr.bf16.mxu0 %v344
        %418 = vmatpush1.bf16.msra.mxu0 %v343
        %419 = vmatprep.subr.bf16.mxu0 %v342
        %420 = vmatpush1.bf16.msra.mxu0 %v341
        %421 = vmatprep.subr.bf16.mxu0 %v372
        %422 = vmatpush2.bf16.msra.mxu0 %v371
        %423 = vmatprep.subr.bf16.mxu0 %v370
        %424 = vmatpush2.bf16.msra.mxu0 %v369
        %425 = vmatprep.subr.bf16.mxu0 %v368
        %426 = vmatpush2.bf16.msra.mxu0 %v367
        %427 = vmatprep.subr.bf16.mxu0 %v366
        %428 = vmatpush2.bf16.msra.mxu0 %v365
        %429 = vmatprep.subr.bf16.mxu0 %v364
        %430 = vmatpush2.bf16.msra.mxu0 %v363
        %431 = vmatprep.subr.bf16.mxu0 %v362
        %432 = vmatpush2.bf16.msra.mxu0 %v361
        %433 = vmatprep.subr.bf16.mxu0 %v360
        %434 = vmatpush2.bf16.msra.mxu0 %v359
        %435 = vmatprep.subr.bf16.mxu0 %v358
        %436 = vmatpush2.bf16.msra.mxu0 %v357
        %437 = vmatprep.mubr.bf16.mxu0 %v242
        %438 = vmatmul.mubr.bf16.gmra.mxu0 %v241
        %v439 = vpop.f32.mrf.mxu0
        %v440 = vadd.f32 0.0, %v439
        %v441 = vpop.f32.mrf.mxu0
        %v442 = vadd.f32 0.0, %v441
        %v443 = vpop.f32.mrf.mxu0
        %v444 = vadd.f32 0.0, %v443
        %v445 = vpop.f32.mrf.mxu0
        %v446 = vadd.f32 0.0, %v445
        %447 = vdwg.mxu0
        %v448 = vmul.f32 %v440, %v440
        %v449 = vmul.f32 %v444, %v444
        %v450 = vmul.f32 %v442, %v442
        %v451 = vmul.f32 %v446, %v446
        %v452 = vadd.f32 %v448, %v450
        %v453 = vadd.f32 %v449, %v451
        %v454 = vrsqrt.pop %v452
        %v455 = vmul.f32 %v452, %v454
        %vm456 = vcmp.eq.f32.partialorder %v452, inf
        %v457 = vsel %vm456, %v452, %v455
        %vm458 = vcmp.eq.f32.partialorder %v452, 0.0
        %v459 = vand.u32 %v452, 2147483648
        %v460 = vsel %vm458, %v459, %v457
        %v461 = vrsqrt.pop %v453
        %v462 = vmul.f32 %v453, %v461
        %vm463 = vcmp.eq.f32.partialorder %v453, inf
        %v464 = vsel %vm463, %v453, %v462
        %vm465 = vcmp.eq.f32.partialorder %v453, 0.0
        %v466 = vand.u32 %v453, 2147483648
        %v467 = vsel %vm465, %v466, %v464
        %v468 = vmul.f32 %v460, 3.90625
        %v469 = vmul.f32 %v467, 3.90625
        %v470 = vadd.f32 %v468, 1.0
        %v471 = vlog2.pop %v470
        %v472 = vmul.f32 %v471, 0.6931472
        %v473 = vmul.f32 -0.5, %v468
        %v474 = vadd.f32 %v473, 1.0
        %v475 = vmul.f32 %v474, %v468
        %v476 = vand.u32 2147483647, %v468
        %vm477 = vcmp.lt.f32.partialorder %v476, 0.0004427343
        %v478 = vsel %vm477, %v475, %v472
        %v479 = vadd.f32 %v469, 1.0
        %v480 = vlog2.pop %v479
        %v481 = vmul.f32 %v480, 0.6931472
        %v482 = vmul.f32 -0.5, %v469
        %v483 = vadd.f32 %v482, 1.0
        %v484 = vmul.f32 %v483, %v469
        %v485 = vand.u32 2147483647, %v469
        %vm486 = vcmp.lt.f32.partialorder %v485, 0.0004427343
        %v487 = vsel %vm486, %v484, %v481
        %488 = vst [vmem:[%s199] sm:$0xff] %v478
        %489 = vst [vmem:[%s199 + $0x8] sm:$0xff] %v487
        %s490 = smul.u32 2, %s19
        %p491 = scmp.lt.s32.totalorder %s18, 1
        %s492 = scalar_select %p491, %s18, 1
        %p493 = scmp.lt.s32.totalorder %s490, 1
        %s494 = scalar_select %p493, %s490, 1
        %s495 = smul.addr %s492, 2
        %s496 = sadd.s32 %s494, %s495
        %s497 = smul.addr %s496, 8
        %s498 = scalar_lea.vmem %s2, %s497
        // Predicated region
        $region33: #{_forward_impl.1} parent=27 // pred_check
          %p499 = pneg %p95
        $region34: #{_forward_impl.1} parent=27 // pred_check_branch
          %501 = sbr.rel (%p499) target = $region36
        $region35: #{_forward_impl.1} parent=27 // pred_region
          %s502 = smul.u32 2, %s19
        $region36: #{_forward_impl.1} parent=27 // pred_fallthru
          _
      $region28: #{_forward_impl.1} parent=5 // pred_fallthru
        _
      %p503 = scmp.le.s32.totalorder 2, %s9
      // Predicated region
      $region37: #{_forward_impl.1} parent=5 // pred_check
        %p504 = pneg %p503
      $region38: #{_forward_impl.1} parent=5 // pred_check_branch
        %506 = sbr.rel (%p504) target = $region40
      $region39: #{_forward_impl.1} parent=5 // pred_region
        %s507 = ssub.s32 %s9, 2
        // Predicated region
        $region41: #{_forward_impl.1} parent=39 // pred_check
          %p508 = pneg %p101
        $region42: #{_forward_impl.1} parent=39 // pred_check_branch
          %510 = sbr.rel (%p508) target = $region44
        $region43: #{_forward_impl.1} parent=39 // pred_region
          %s511 = smul.u32 2, %s21
          %p512 = scmp.lt.s32.totalorder %s20, 1
          %s513 = scalar_select %p512, %s20, 1
          %p514 = scmp.lt.s32.totalorder %s511, 1
          %s515 = scalar_select %p514, %s511, 1
          %s516 = smul.addr %s513, 2
          %s517 = sadd.s32 %s515, %s516
          %s518 = smul.addr %s517, 8
          %s519 = scalar_lea.vmem %s2, %s518
        $region44: #{_forward_impl.1} parent=39 // pred_fallthru
          _
      $region40: #{_forward_impl.1} parent=5 // pred_fallthru
        _
    $region6: #{_forward_impl.1} parent=1 // loop_footer
      %s13 = sadd.s32 1, %s9
    $region7: #{_forward_impl.1} parent=1 // loop_footer_branch
      %8 = sbr.rel target = $region3
    $region8: #{_forward_impl.1} parent=1 // loop_exit
      _
    %520 = vsyncpa [#allocation3], 1
    %s521 = scalar_lea.sflag [#allocation3], 1
    %522 = vsyncpa %s521, 1

</llo_original>
